<compile_context>
chip_gen: v6e
topology: v6e:2x2x1
jax: 0.10.0
libtpu: 0.0.40
codegen_flags: <defaults>
</compile_context>

<pallas_src>
import jax
import jax.numpy as jnp
from jax.experimental import pallas as pl
from jax.experimental.pallas import tpu as pltpu

_LANES = 128


# ----------------------------------------------------------------------------
# Primary path: zero-DMA pass-through (output aliases input, nothing moves).
# ----------------------------------------------------------------------------
def _passthrough_kernel(x_ref, o_ref, flag_ref):
    # Output aliases the input buffer and both stay in HBM (memory_space=pl.ANY),
    # so there is nothing to move. Write one SMEM scalar so the lowered body is
    # non-trivial; the refs themselves are intentionally untouched.
    del x_ref, o_ref
    flag_ref[0] = jnp.int32(1)


def _passthrough(x):
    return pl.pallas_call(
        _passthrough_kernel,
        out_shape=jax.ShapeDtypeStruct(x.shape, x.dtype),
        in_specs=[pl.BlockSpec(memory_space=pl.ANY)],
        out_specs=pl.BlockSpec(memory_space=pl.ANY),
        scratch_shapes=[pltpu.SMEM((1,), jnp.int32)],
        input_output_aliases={0: 0},  # output buffer == input buffer
        cost_estimate=pl.CostEstimate(flops=0, transcendentals=0, bytes_accessed=0),
    )(x)


# ----------------------------------------------------------------------------
# Optional path: explicit HBM->HBM copy (fresh output buffer), lane-dense tiles.
# ----------------------------------------------------------------------------
def _identity_copy_kernel(x_ref, o_ref):
    # One lane-dense (tile_rows, 128) block per grid step: pure VMEM copy.
    o_ref[...] = x_ref[...]


def _identity_copy(x, *, target_block_bytes=2 << 20):
    """Returns a fresh buffer equal to x via a tiled Pallas copy."""
    orig_shape = x.shape
    dtype = x.dtype
    total = int(x.size)
    itemsize = jnp.dtype(dtype).itemsize

    # Sublane granularity for the packed dtype (f32: 8, bf16/f16: 16, int8/fp8: 32).
    sublane = {4: 8, 2: 16, 1: 32}.get(itemsize, 8)

    if total == 0 or total % _LANES != 0 or (total // _LANES) % sublane != 0:
        # Ragged sizes: no pad/slice HBM round-trips — the module's forward
        # returns its input, so returning x is exact and free.
        return x

    rows = total // _LANES

    # ~2 MiB blocks: big enough to amortize the ~0.35 us per-grid-step overhead on
    # v6e/v7x, small enough that in+out double-buffered blocks (~8 MiB) fit well
    # under the scoped VMEM default on every generation (16/32/32 MiB).
    rows_cap = max(sublane, target_block_bytes // (_LANES * itemsize))
    rows_cap = (rows_cap // sublane) * sublane
    tile_rows = min(rows_cap, rows)

    # Force >=2 grid steps when possible so v7x's two TensorCores both get work
    # and the pipeline can overlap the input DMA of step i+1 with step i.
    if rows // tile_rows < 2 and rows >= 2 * sublane:
        half = ((rows // 2 + sublane - 1) // sublane) * sublane
        tile_rows = min(tile_rows, half)

    # Shrink until tile_rows divides rows exactly (terminates at `sublane`),
    # so no padding / trailing slice is ever needed.
    while rows % tile_rows != 0:
        tile_rows -= sublane
    grid_steps = rows // tile_rows

    # Lane-dense 2D view; contiguous reshape, no relayout copy.
    x2 = x.reshape(rows, _LANES)

    out2 = pl.pallas_call(
        _identity_copy_kernel,
        out_shape=jax.ShapeDtypeStruct((rows, _LANES), dtype),
        grid=(grid_steps,),
        in_specs=[pl.BlockSpec((tile_rows, _LANES), lambda i: (i, 0))],
        out_specs=pl.BlockSpec((tile_rows, _LANES), lambda i: (i, 0)),
        compiler_params=pltpu.CompilerParams(
            dimension_semantics=("parallel",),
        ),
        cost_estimate=pl.CostEstimate(
            flops=0, transcendentals=0, bytes_accessed=2 * total * itemsize),
    )(x2)

    return out2.reshape(orig_shape)


def empty_module_forward(x, *, copy=False):
    """JAX/Pallas equivalent of EmptyModule.forward (identity).

    copy=False (default): zero-DMA aliased pass-through.
    copy=True:            explicit tiled HBM->HBM copy (fresh buffer).
    """
    if copy:
        return _identity_copy(x)
    return _passthrough(x)


if __name__ == "__main__":
    key = jax.random.PRNGKey(0)
    # Small NCHW-style input consistent with the module's forward (identity).
    x = jax.random.normal(key, (2, 4, 16, 16), dtype=jnp.float32)

    # Primary zero-copy pass-through path.
    out = jax.block_until_ready(empty_module_forward(x))
    assert out.shape == x.shape, (out.shape, x.shape)
    assert out.dtype == x.dtype, (out.dtype, x.dtype)
    assert jnp.array_equal(out, x), "identity (pass-through) mismatch vs input"

    # Optional explicit-copy path.
    out_copy = jax.block_until_ready(empty_module_forward(x, copy=True))
    assert out_copy.shape == x.shape, (out_copy.shape, x.shape)
    assert out_copy.dtype == x.dtype, (out_copy.dtype, x.dtype)
    assert jnp.array_equal(out_copy, x), "identity (copy) mismatch vs input"

    print("KERNEL_OK")
</pallas_src>

<mosaic_0001>
module attributes {stable_mosaic.version = 11 : i64} {
  func.func @_passthrough_kernel(%arg0: memref<2x4x16x16xf32, #tpu.memory_space<any>>, %arg1: memref<2x4x16x16xf32, #tpu.memory_space<any>>, %arg2: memref<1xi32, #tpu.memory_space<smem>>) attributes {dimension_semantics = [], scalar_prefetch = 0 : i64, scratch_operands = 1 : i64, tpu.core_type = #tpu.core_type<tc>} {
    %c1_i32 = arith.constant 1 : i32
    %c0 = arith.constant 0 : index
    %0 = memref.load %arg2[%c0] : memref<1xi32, #tpu.memory_space<smem>>
    memref.store %c1_i32, %arg2[%c0] : memref<1xi32, #tpu.memory_space<smem>>
    return
  }
}

</mosaic_0001>

<llo_original>
// kernel: tpu_custom_call.1
$region0: #{tpu_custom_call.1}
  #allocation0 [shape = 'u32[]', space=smem, size = 0x4, offset = 0x4, fixed_abs, tag = 'smem constant byte address 0x4 - core index']
  #allocation1 [shape = 'u32[144,128]{1,0:T(1,128)}', space=vmem, size = 0x12000, scoped, tag = 'internal scratch']
  #allocation2 [shape = 's32[1]{0:T(128)}', space=smem, size = 0x200, scoped, tag = 'scratch operand']
  %s0 = inlined_call_operand.hbm [shape: f32[2,4,16,16], index: 0, kind: input, shape index: {}, may-alias: {0,1}]
  %s1 = inlined_call_operand.hbm [shape: f32[2,4,16,16], index: 1, kind: output, shape index: {}, may-alias: {0,1}]
  %s2 = sld [smem:[#allocation0]]
  $region2: #{tpu_custom_call.1} parent=0
    _
  %s4 = ssub.s32 1, %s2
  %s5 = scalar_select 0, %s4, %s2
  %s6 = scalar_lea.smem [#allocation2], 0
  %7 = sst [smem:[%s6]] 1

</llo_original>
